<compile_context>
chip_gen: v7x
topology: tpu7x:2x2x1
jax: 0.10.0
libtpu: 0.0.40
codegen_flags: <defaults>
</compile_context>

<pallas_src>
import jax
import jax.numpy as jnp
from jax.experimental import pallas as pl
from jax.experimental.pallas import tpu as pltpu

# ---------------- model hyper-parameters (small, synthetic) ----------------
RCTFP = 32               # args.rctfp_size
PRODFP = 32              # args.prodfp_size
DIFFFP = 32              # args.difffp_size
ENC_HIDDEN = (64, 32)    # args.encoder_hidden_size
F_TOTAL = RCTFP + PRODFP + DIFFFP          # 96 (already a sublane multiple of 8 -> no pad)
H1 = ENC_HIDDEN[0]                         # 64
H2 = ENC_HIDDEN[1]                         # 32
OUT_IN = 6 * H2 + 1                        # 193 (input dim of output_layer)
W2_ROWS = 3 * H2 + 1                       # 97 rows: [r | p | d | folded linear output]
W2_ROWS_PAD = 104                          # padded up to a sublane multiple of 8
COS_EPS = 1e-8
TM_CAP = 4096                              # rows (lanes) per grid step, multiple of 128

N, K = 2, 8              # demo batch: N samples x K reactions


def _cdiv(a, b):
    return -(-a // b)


def _choose_tiling(m):
    """Rows-per-tile (lane axis) and tile count.

    * tm is a multiple of 128, capped at TM_CAP.  Per-row VMEM footprint is only
      ~2.5 KiB, so TM_CAP=4096 (~10 MiB) fits every generation's scoped VMEM.
    * No padding-only grid steps: one tile whenever m <= TM_CAP (the grid is a
      sequential loop on single-TC v5e/v6e); >= 2 *real* tiles appear automatically
      when m > TM_CAP, which is what keeps both v7x TensorCores busy.
    """
    num_tiles = max(1, _cdiv(m, TM_CAP))
    tm = 128 * _cdiv(_cdiv(m, num_tiles), 128)
    tm = int(max(128, min(TM_CAP, tm)))
    return tm, num_tiles


# ------------------------------ Pallas kernel -------------------------------
def ebm_kernel(xt_ref,                # (F_TOTAL, TM)  bf16 fingerprints, transposed
               w1t_ref, b1t_ref,      # (3*H1, F_TOTAL) bf16, (3*H1, 1) f32
               w2t_ref, b2t_ref,      # (W2_ROWS_PAD, 3*H1) bf16, (W2_ROWS_PAD, 1) f32
               wquad_ref,             # (3*H2, 1) f32 output weights for [p*r, d*r, d*p]
               scal_ref,              # SMEM (2,) f32: [w_sim, out_bias]
               out_ref):              # (1, TM) f32 lane-dense energies
    # Fused block-diagonal encoders: Linear -> ReLU -> (Dropout=identity) -> Linear.
    # Both MXU pushes use bf16 operands with f32 accumulation.
    h1 = jnp.dot(w1t_ref[...], xt_ref[...],
                 preferred_element_type=jnp.float32) + b1t_ref[...]   # (3*H1, TM) f32
    h1 = jnp.maximum(h1, 0.0)
    emb = jnp.dot(w2t_ref[...], h1.astype(jnp.bfloat16),
                  preferred_element_type=jnp.float32) + b2t_ref[...]  # (W2_ROWS_PAD, TM) f32

    r = emb[0:H2, :]                                             # (H2, TM)
    p = emb[H2:2 * H2, :]
    d = emb[2 * H2:3 * H2, :]
    lin = emb[3 * H2:3 * H2 + 1, :]                              # folded wlin . [r|p|d] + wlin . b2

    # Cosine similarity along the embedding dim (sublane reduce -> lane row).
    dot_rp = jnp.sum(r * p, axis=0, keepdims=True)               # (1, TM)
    nr2 = jnp.sum(r * r, axis=0, keepdims=True)
    np2 = jnp.sum(p * p, axis=0, keepdims=True)
    sim = dot_rp * jax.lax.rsqrt(jnp.maximum(nr2 * np2, COS_EPS * COS_EPS))

    # Quadratic part of the output Linear without materializing comb.
    wquad = wquad_ref[...]                                       # (3*H2, 1) f32
    quad_terms = ((p * r) * wquad[0:H2, :]
                  + (d * r) * wquad[H2:2 * H2, :]
                  + (d * p) * wquad[2 * H2:3 * H2, :])           # (H2, TM)
    quad = jnp.sum(quad_terms, axis=0, keepdims=True)            # (1, TM)

    out_ref[...] = lin + quad + sim * scal_ref[0] + scal_ref[1]  # (1, TM)


# ------------------------------ host wrapper --------------------------------
@jax.jit
def feedforward_ebm_forward(batch, params):
    """batch: (N, K, F_TOTAL) float32 -> energies (N, K) float32."""
    (rw1, rb1, rw2, rb2,
     pw1, pb1, pw2, pb2,
     dw1, db1, dw2, db2,
     ow, ob) = params

    n, k, f = batch.shape
    assert f == F_TOTAL
    m = n * k
    tm, num_tiles = _choose_tiling(m)
    m_pad = num_tiles * tm

    # Transposed, column-padded fingerprints: reactions on the lane axis, bf16.
    # TODO(synk): for very large m the dot_general-on-natural-layout variant would
    # avoid this host-side transpose entirely; bf16 + no feature pad already cuts
    # the repack traffic ~4x vs the previous f32/128-pad version.
    x = batch.reshape(m, f)
    xt = jnp.zeros((F_TOTAL, m_pad), jnp.bfloat16)
    xt = xt.at[:, :m].set(x.T.astype(jnp.bfloat16))

    # Block-diagonal fused encoder L1 weights (transposed), bf16 operands.
    w1t = jnp.zeros((3 * H1, F_TOTAL), jnp.float32)
    w1t = w1t.at[0:H1, 0:RCTFP].set(rw1.T)
    w1t = w1t.at[H1:2 * H1, RCTFP:RCTFP + PRODFP].set(pw1.T)
    w1t = w1t.at[2 * H1:3 * H1, RCTFP + PRODFP:F_TOTAL].set(dw1.T)
    b1t = jnp.concatenate([rb1, pb1, db1], axis=-1).T            # (3*H1, 1) f32

    # Block-diagonal fused encoder L2 weights + folded linear-output row.
    w2core = jnp.zeros((3 * H2, 3 * H1), jnp.float32)
    w2core = w2core.at[0:H2, 0:H1].set(rw2.T)
    w2core = w2core.at[H2:2 * H2, H1:2 * H1].set(pw2.T)
    w2core = w2core.at[2 * H2:3 * H2, 2 * H1:3 * H1].set(dw2.T)
    b2core = jnp.concatenate([rb2, pb2, db2], axis=-1).T         # (3*H2, 1) f32

    wlin = ow[0:3 * H2, :]                                       # (96, 1): weights for r, p, d
    lin_row = wlin.T @ w2core                                    # (1, 3*H1)
    lin_b = wlin.T @ b2core                                      # (1, 1)

    w2t = jnp.zeros((W2_ROWS_PAD, 3 * H1), jnp.float32)
    w2t = w2t.at[0:3 * H2, :].set(w2core)
    w2t = w2t.at[3 * H2:3 * H2 + 1, :].set(lin_row)
    b2t = jnp.zeros((W2_ROWS_PAD, 1), jnp.float32)
    b2t = b2t.at[0:3 * H2, :].set(b2core)
    b2t = b2t.at[3 * H2:3 * H2 + 1, :].set(lin_b)

    wquad = ow[3 * H2:6 * H2, :]                                 # (96, 1): p*r, d*r, d*p
    scal = jnp.stack([ow[6 * H2, 0], ob[0, 0]])                  # (2,): [w_sim, bias]

    out = pl.pallas_call(
        ebm_kernel,
        out_shape=jax.ShapeDtypeStruct((1, m_pad), jnp.float32),
        grid_spec=pltpu.PrefetchScalarGridSpec(
            num_scalar_prefetch=0,
            grid=(num_tiles,),
            in_specs=[
                # xt is the only streamed input; weights are grid-invariant.
                # (If the xt DMA shows up exposed after bf16 + big TM, add
                #  pipeline_mode=pl.Buffered(3) here.)
                pl.BlockSpec((F_TOTAL, tm), lambda i: (0, i)),             # xt tile
                pl.BlockSpec((3 * H1, F_TOTAL), lambda i: (0, 0)),         # w1t
                pl.BlockSpec((3 * H1, 1), lambda i: (0, 0)),               # b1t
                pl.BlockSpec((W2_ROWS_PAD, 3 * H1), lambda i: (0, 0)),     # w2t (+folded lin)
                pl.BlockSpec((W2_ROWS_PAD, 1), lambda i: (0, 0)),          # b2t (+folded lin bias)
                pl.BlockSpec((3 * H2, 1), lambda i: (0, 0)),               # wquad
                pl.BlockSpec(memory_space=pltpu.MemorySpace.SMEM),         # scalars
            ],
            out_specs=pl.BlockSpec((1, tm), lambda i: (0, i)),             # lane-dense out
        ),
        compiler_params=pltpu.CompilerParams(
            dimension_semantics=("parallel",),
            vmem_limit_bytes=32 * 1024 * 1024),   # v5e default is 16 MiB; harmless elsewhere
    )(xt, w1t.astype(jnp.bfloat16), b1t,
      w2t.astype(jnp.bfloat16), b2t, wquad, scal)

    return out[0, :m].reshape(n, k)        # .squeeze(dim=-1)


# --------------------------- deterministic params ---------------------------
def init_params(key):
    def linear(key, din, dout, scale=0.1):
        kw, kb = jax.random.split(key)
        w = scale * jax.random.normal(kw, (din, dout), jnp.float32)
        b = scale * jax.random.normal(kb, (1, dout), jnp.float32)
        return w, b

    keys = jax.random.split(key, 7)
    rw1, rb1 = linear(keys[0], RCTFP, H1)
    rw2, rb2 = linear(keys[1], H1, H2)
    pw1, pb1 = linear(keys[2], PRODFP, H1)
    pw2, pb2 = linear(keys[3], H1, H2)
    dw1, db1 = linear(keys[4], DIFFFP, H1)
    dw2, db2 = linear(keys[5], H1, H2)
    ow, ob = linear(keys[6], OUT_IN, 1)
    return (rw1, rb1, rw2, rb2, pw1, pb1, pw2, pb2,
            dw1, db1, dw2, db2, ow, ob)


# ----------------------------- pure-JAX reference ----------------------------
def reference_forward(batch, params):
    (rw1, rb1, rw2, rb2, pw1, pb1, pw2, pb2,
     dw1, db1, dw2, db2, ow, ob) = params
    x = batch.reshape(-1, F_TOTAL)

    def enc(xin, w1, b1, w2, b2):
        h = jnp.maximum(xin @ w1 + b1, 0.0)
        return h @ w2 + b2

    r = enc(x[:, :RCTFP], rw1, rb1, rw2, rb2)
    p = enc(x[:, RCTFP:RCTFP + PRODFP], pw1, pb1, pw2, pb2)
    d = enc(x[:, RCTFP + PRODFP:], dw1, db1, dw2, db2)
    # TODO(synk): matches the kernel's clamp max(||r||*||p||, eps); torch's
    # CosineSimilarity clamps each norm separately (differs only for ~zero embeddings).
    sim = (jnp.sum(r * p, -1, keepdims=True)
           / jnp.maximum(jnp.linalg.norm(r, axis=-1, keepdims=True)
                         * jnp.linalg.norm(p, axis=-1, keepdims=True), COS_EPS))
    comb = jnp.concatenate([r, p, d, p * r, d * r, d * p, sim], axis=-1)
    return (comb @ ow + ob).reshape(batch.shape[0], batch.shape[1])


if __name__ == "__main__":
    key = jax.random.PRNGKey(0)
    k_batch, k_params = jax.random.split(key)
    batch = jax.random.normal(k_batch, (N, K, F_TOTAL), jnp.float32)
    params = init_params(k_params)

    out = feedforward_ebm_forward(batch, params)
    out = jax.block_until_ready(out)

    ref = reference_forward(batch, params)
    assert out.shape == (N, K)
    # Tolerance loosened vs. the f32 reference because MXU operands are bf16.
    assert jnp.allclose(out, ref, atol=2e-2, rtol=2e-2), \
        float(jnp.max(jnp.abs(out - ref)))

    # TODO(synk): Dropout layers are eval-mode identity; PyTorch-specific weight
    # init (model_utils.initialize_weights) is replaced by deterministic jax.random.
    print("KERNEL_OK")
</pallas_src>

<mosaic_0001>
module attributes {stable_mosaic.version = 11 : i64} {
  func.func @ebm_kernel(%arg0: i32, %arg1: memref<96x128xbf16, #tpu.memory_space<vmem>>, %arg2: memref<192x96xbf16, #tpu.memory_space<vmem>>, %arg3: memref<192x1xf32, #tpu.memory_space<vmem>>, %arg4: memref<104x192xbf16, #tpu.memory_space<vmem>>, %arg5: memref<104x1xf32, #tpu.memory_space<vmem>>, %arg6: memref<96x1xf32, #tpu.memory_space<vmem>>, %arg7: memref<2xf32, #tpu.memory_space<smem>>, %arg8: memref<1x128xf32, #tpu.memory_space<vmem>>) attributes {dimension_semantics = [#tpu.dimension_semantics<parallel>], iteration_bounds = array<i64: 1>, scalar_prefetch = 0 : i64, scratch_operands = 0 : i64, tpu.core_type = #tpu.core_type<tc>, window_params = [{transform_indices = @transform_0, window_bounds = array<i64: 96, 128>}, {pipeline_mode = #tpu.pipeline_mode<synchronous>, transform_indices = @transform_1, window_bounds = array<i64: 192, 96>}, {pipeline_mode = #tpu.pipeline_mode<synchronous>, transform_indices = @transform_2, window_bounds = array<i64: 192, 1>}, {pipeline_mode = #tpu.pipeline_mode<synchronous>, transform_indices = @transform_3, window_bounds = array<i64: 104, 192>}, {pipeline_mode = #tpu.pipeline_mode<synchronous>, transform_indices = @transform_4, window_bounds = array<i64: 104, 1>}, {pipeline_mode = #tpu.pipeline_mode<synchronous>, transform_indices = @transform_5, window_bounds = array<i64: 96, 1>}, {transform_indices = @transform_6, window_bounds = array<i64: 2>}, {transform_indices = @transform_7, window_bounds = array<i64: 1, 128>}]} {
    %c0 = arith.constant 0 : index
    %c0_0 = arith.constant 0 : index
    %0 = vector.load %arg2[%c0, %c0_0] : memref<192x96xbf16, #tpu.memory_space<vmem>>, vector<192x96xbf16>
    %c0_1 = arith.constant 0 : index
    %c0_2 = arith.constant 0 : index
    %1 = vector.load %arg1[%c0_1, %c0_2] : memref<96x128xbf16, #tpu.memory_space<vmem>>, vector<96x128xbf16>
    %cst = arith.constant dense<0.000000e+00> : vector<192x128xf32>
    %2 = tpu.matmul %0, %1, %cst {dimension_numbers = #tpu.dot_dimension_numbers<[1], [0], [0], [1], [0, 0, 1, 1], [], []>} : vector<192x96xbf16>, vector<96x128xbf16>, vector<192x128xf32> -> vector<192x128xf32>
    %c0_3 = arith.constant 0 : index
    %c0_4 = arith.constant 0 : index
    %3 = vector.load %arg3[%c0_3, %c0_4] : memref<192x1xf32, #tpu.memory_space<vmem>>, vector<192x1xf32>
    %4 = vector.broadcast %3 : vector<192x1xf32> to vector<192x128xf32>
    %5 = arith.addf %2, %4 : vector<192x128xf32>
    %cst_5 = arith.constant 0.000000e+00 : f32
    %6 = vector.broadcast %cst_5 : f32 to vector<192x128xf32>
    %7 = arith.maximumf %5, %6 : vector<192x128xf32>
    %c0_6 = arith.constant 0 : index
    %c0_7 = arith.constant 0 : index
    %8 = vector.load %arg4[%c0_6, %c0_7] : memref<104x192xbf16, #tpu.memory_space<vmem>>, vector<104x192xbf16>
    %9 = arith.truncf %7 : vector<192x128xf32> to vector<192x128xbf16>
    %cst_8 = arith.constant dense<0.000000e+00> : vector<104x128xf32>
    %10 = tpu.matmul %8, %9, %cst_8 {dimension_numbers = #tpu.dot_dimension_numbers<[1], [0], [0], [1], [0, 0, 1, 1], [], []>} : vector<104x192xbf16>, vector<192x128xbf16>, vector<104x128xf32> -> vector<104x128xf32>
    %c0_9 = arith.constant 0 : index
    %c0_10 = arith.constant 0 : index
    %11 = vector.load %arg5[%c0_9, %c0_10] : memref<104x1xf32, #tpu.memory_space<vmem>>, vector<104x1xf32>
    %12 = vector.broadcast %11 : vector<104x1xf32> to vector<104x128xf32>
    %13 = arith.addf %10, %12 : vector<104x128xf32>
    %14 = vector.extract_strided_slice %13 {offsets = [0, 0], sizes = [32, 128], strides = [1, 1]} : vector<104x128xf32> to vector<32x128xf32>
    %15 = vector.extract_strided_slice %13 {offsets = [32, 0], sizes = [32, 128], strides = [1, 1]} : vector<104x128xf32> to vector<32x128xf32>
    %16 = vector.extract_strided_slice %13 {offsets = [64, 0], sizes = [32, 128], strides = [1, 1]} : vector<104x128xf32> to vector<32x128xf32>
    %17 = vector.extract_strided_slice %13 {offsets = [96, 0], sizes = [1, 128], strides = [1, 1]} : vector<104x128xf32> to vector<1x128xf32>
    %18 = arith.mulf %14, %15 : vector<32x128xf32>
    %cst_11 = arith.constant dense<0.000000e+00> : vector<128xf32>
    %19 = vector.multi_reduction <add>, %18, %cst_11 [0] : vector<32x128xf32> to vector<128xf32>
    %20 = vector.shape_cast %19 : vector<128xf32> to vector<1x128xf32>
    %21 = arith.mulf %14, %14 : vector<32x128xf32>
    %cst_12 = arith.constant dense<0.000000e+00> : vector<128xf32>
    %22 = vector.multi_reduction <add>, %21, %cst_12 [0] : vector<32x128xf32> to vector<128xf32>
    %23 = vector.shape_cast %22 : vector<128xf32> to vector<1x128xf32>
    %24 = arith.mulf %15, %15 : vector<32x128xf32>
    %cst_13 = arith.constant dense<0.000000e+00> : vector<128xf32>
    %25 = vector.multi_reduction <add>, %24, %cst_13 [0] : vector<32x128xf32> to vector<128xf32>
    %26 = vector.shape_cast %25 : vector<128xf32> to vector<1x128xf32>
    %27 = arith.mulf %23, %26 : vector<1x128xf32>
    %cst_14 = arith.constant 1.000000e-16 : f32
    %28 = vector.broadcast %cst_14 : f32 to vector<1x128xf32>
    %29 = arith.maximumf %27, %28 : vector<1x128xf32>
    %30 = math.rsqrt %29 : vector<1x128xf32>
    %31 = arith.mulf %20, %30 : vector<1x128xf32>
    %c0_15 = arith.constant 0 : index
    %c0_16 = arith.constant 0 : index
    %32 = vector.load %arg6[%c0_15, %c0_16] : memref<96x1xf32, #tpu.memory_space<vmem>>, vector<96x1xf32>
    %33 = arith.mulf %15, %14 : vector<32x128xf32>
    %34 = vector.extract_strided_slice %32 {offsets = [0, 0], sizes = [32, 1], strides = [1, 1]} : vector<96x1xf32> to vector<32x1xf32>
    %35 = vector.broadcast %34 : vector<32x1xf32> to vector<32x128xf32>
    %36 = arith.mulf %33, %35 : vector<32x128xf32>
    %37 = arith.mulf %16, %14 : vector<32x128xf32>
    %38 = vector.extract_strided_slice %32 {offsets = [32, 0], sizes = [32, 1], strides = [1, 1]} : vector<96x1xf32> to vector<32x1xf32>
    %39 = vector.broadcast %38 : vector<32x1xf32> to vector<32x128xf32>
    %40 = arith.mulf %37, %39 : vector<32x128xf32>
    %41 = arith.addf %36, %40 : vector<32x128xf32>
    %42 = arith.mulf %16, %15 : vector<32x128xf32>
    %43 = vector.extract_strided_slice %32 {offsets = [64, 0], sizes = [32, 1], strides = [1, 1]} : vector<96x1xf32> to vector<32x1xf32>
    %44 = vector.broadcast %43 : vector<32x1xf32> to vector<32x128xf32>
    %45 = arith.mulf %42, %44 : vector<32x128xf32>
    %46 = arith.addf %41, %45 : vector<32x128xf32>
    %cst_17 = arith.constant dense<0.000000e+00> : vector<128xf32>
    %47 = vector.multi_reduction <add>, %46, %cst_17 [0] : vector<32x128xf32> to vector<128xf32>
    %48 = vector.shape_cast %47 : vector<128xf32> to vector<1x128xf32>
    %49 = arith.addf %17, %48 : vector<1x128xf32>
    %c0_18 = arith.constant 0 : index
    %50 = memref.load %arg7[%c0_18] : memref<2xf32, #tpu.memory_space<smem>>
    %51 = vector.broadcast %50 : f32 to vector<1x128xf32>
    %52 = arith.mulf %31, %51 : vector<1x128xf32>
    %53 = arith.addf %49, %52 : vector<1x128xf32>
    %c1 = arith.constant 1 : index
    %54 = memref.load %arg7[%c1] : memref<2xf32, #tpu.memory_space<smem>>
    %55 = vector.broadcast %54 : f32 to vector<1x128xf32>
    %56 = arith.addf %53, %55 : vector<1x128xf32>
    %c0_19 = arith.constant 0 : index
    %c0_20 = arith.constant 0 : index
    %57 = vector.load %arg8[%c0_19, %c0_20] : memref<1x128xf32, #tpu.memory_space<vmem>>, vector<1x128xf32>
    tpu.vector_store %arg8[%c0_19, %c0_20], %56 {strides = array<i32>} : memref<1x128xf32, #tpu.memory_space<vmem>>, vector<1x128xf32>,
    return
  }
  func.func @transform_0(%arg0: i32) -> (i32, i32) {
    %c0_i32 = arith.constant 0 : i32
    %c0_i32_0 = arith.constant 0 : i32
    return %c0_i32, %arg0 : i32, i32
  }
  func.func @transform_1(%arg0: i32) -> (i32, i32) {
    %c0_i32 = arith.constant 0 : i32
    %c0_i32_0 = arith.constant 0 : i32
    %c0_i32_1 = arith.constant 0 : i32
    return %c0_i32, %c0_i32_0 : i32, i32
  }
  func.func @transform_2(%arg0: i32) -> (i32, i32) {
    %c0_i32 = arith.constant 0 : i32
    %c0_i32_0 = arith.constant 0 : i32
    %c0_i32_1 = arith.constant 0 : i32
    return %c0_i32, %c0_i32_0 : i32, i32
  }
  func.func @transform_3(%arg0: i32) -> (i32, i32) {
    %c0_i32 = arith.constant 0 : i32
    %c0_i32_0 = arith.constant 0 : i32
    %c0_i32_1 = arith.constant 0 : i32
    return %c0_i32, %c0_i32_0 : i32, i32
  }
  func.func @transform_4(%arg0: i32) -> (i32, i32) {
    %c0_i32 = arith.constant 0 : i32
    %c0_i32_0 = arith.constant 0 : i32
    %c0_i32_1 = arith.constant 0 : i32
    return %c0_i32, %c0_i32_0 : i32, i32
  }
  func.func @transform_5(%arg0: i32) -> (i32, i32) {
    %c0_i32 = arith.constant 0 : i32
    %c0_i32_0 = arith.constant 0 : i32
    %c0_i32_1 = arith.constant 0 : i32
    return %c0_i32, %c0_i32_0 : i32, i32
  }
  func.func @transform_6(%arg0: i32) -> i32 {
    %c0_i32 = arith.constant 0 : i32
    %c0_i32_0 = arith.constant 0 : i32
    return %c0_i32 : i32
  }
  func.func @transform_7(%arg0: i32) -> (i32, i32) {
    %c0_i32 = arith.constant 0 : i32
    %c0_i32_0 = arith.constant 0 : i32
    return %c0_i32, %arg0 : i32, i32
  }
}

</mosaic_0001>

<llo_original>
// kernel: squeeze.5
$region0: #{squeeze.5}
  %s0 = inlined_call_operand.vmem [shape: f32[16], index: 0, kind: input, shape index: {}]
  %s1 = inlined_call_operand.hbm [shape: f32[2,8], index: 1, kind: output, shape index: {}]
  $region1: #{squeeze.5} parent=0
    #allocation0 [shape = 'u8[1024]{0}', space=vmem, size = 0x400, scoped, tag = 'operand span for operand 1']
    #allocation1 [shape = 's32[1]{0}', space=sflag, size = 0x4, scoped, tag = 'scoped memory for squeeze.5']
    #allocation2 [shape = 'u8[4096]{0}', space=vmem, size = 0x1000, scoped, tag = 'scoped mem for output reshape']
    #allocation3 [shape = 'u8[4096]{0}', space=vmem, size = 0x1000, scoped, tag = 'scoped mem for input reshape']
    %2 = vsyncpa [#allocation1], 0
    %s4 = sshllo.u32 0, 1
    %v5 = vld [vmem:[%s0] sm:%s4]
    %6 = vst [vmem:[#allocation3] sm:%s4] %v5
    %v7 = vld [vmem:[#allocation3] sm:$0x1]
    %vm8 = vcmask 64512
    %9 = vst.msk [vmem:[#allocation2] sm:$0x1] %vm8, %v7
    %v10 = vld [vmem:[#allocation3] sm:$0x1]
    %11 = vrot.lane.b32.xlu0 %v10, 120
    %v12 = vpop.permute.xlu0 %11
    %vm13 = vcmask 64512
    %s14 = scalar_lea.vmem [#allocation2], 1
    %15 = vst.msk [vmem:[%s14] sm:$0x1] %vm13, %v12
    %s17 = sshllo.u32 0, 2
    %v19 = vld [vmem:[#allocation2] sm:%s17]
    %s20 = sshllo.u32 0, 2
    %21 = vst [vmem:[#allocation0] sm:%s20] %v19
    %s23 = ssub.s32 32, 32
    %24 = vsyncadd [#allocation1], %s23
    %s26 = sshll.u32 [#allocation0], 4
    %s27 = int_to_ptr.vmem [resolvable:$true] %s26
    %29 = dma.vmem_to_hbm [thread:$0]  %s27, 32, %s1, [#allocation1]
    %30 = dma.done [#allocation1], 32
    %31 = vsyncpa [#allocation1], 1

// kernel: feedforward_ebm_forward.1
$region0: #{feedforward_ebm_forward.1}
  #allocation0 [shape = 'u32[]', space=smem, size = 0x4, offset = 0x4, fixed_abs, tag = 'smem constant byte address 0x4 - core index']
  #allocation1 [shape = 'u32[144,128]{1,0:T(1,128)}', space=vmem, size = 0x12000, scoped, tag = 'internal scratch']
  %s0 = inlined_call_operand.vmem [shape: bf16[96,128], index: 0, kind: input, shape index: {}]
  %s1 = inlined_call_operand.vmem [shape: bf16[192,96], index: 1, kind: input, shape index: {}]
  %s2 = inlined_call_operand.vmem [shape: f32[192,1], index: 2, kind: input, shape index: {}]
  %s3 = inlined_call_operand.vmem [shape: bf16[104,192], index: 3, kind: input, shape index: {}]
  %s4 = inlined_call_operand.vmem [shape: f32[104,1], index: 4, kind: input, shape index: {}]
  %s5 = inlined_call_operand.vmem [shape: f32[96,1], index: 5, kind: input, shape index: {}]
  %s6 = inlined_call_operand.vmem [shape: f32[2], index: 6, kind: input, shape index: {}]
  %s7 = inlined_call_operand.vmem [shape: f32[1,128], index: 7, kind: output, shape index: {}]
  %s8 = sld [smem:[#allocation0]]
  $region42: #{feedforward_ebm_forward.1} parent=0
    _
  %s10 = ssub.s32 1, %s8
  %s11 = scalar_select 0, %s10, %s8
  $region1: #{feedforward_ebm_forward.1} parent=0
    #allocation2 [shape = 'u8[512]{0}', space=smem, size = 0x200, scoped, tag = 'input window, operand 6, single buffered']
    #allocation3 [shape = 's32[1]{0}', space=sflag, size = 0x4, scoped, tag = 'scoped memory for feedforward_ebm_forward.1']
    %12 = vsyncpa [#allocation3], 0
    // Predicated region
    $region2: #{feedforward_ebm_forward.1} parent=1 // pred_check
      _
    $region3: #{feedforward_ebm_forward.1} parent=1 // pred_check_branch
      %14 = sbr.rel (0) target = $region5
    $region4: #{feedforward_ebm_forward.1} parent=1 // pred_region
      _
    $region5: #{feedforward_ebm_forward.1} parent=1 // pred_fallthru
      _
    // Predicated region
    $region6: #{feedforward_ebm_forward.1} parent=1 // pred_check
      _
    $region7: #{feedforward_ebm_forward.1} parent=1 // pred_check_branch
      %16 = sbr.rel (0) target = $region9
    $region8: #{feedforward_ebm_forward.1} parent=1 // pred_region
      _
    $region9: #{feedforward_ebm_forward.1} parent=1 // pred_fallthru
      _
    // Predicated region
    $region10: #{feedforward_ebm_forward.1} parent=1 // pred_check
      _
    $region11: #{feedforward_ebm_forward.1} parent=1 // pred_check_branch
      %18 = sbr.rel (0) target = $region13
    $region12: #{feedforward_ebm_forward.1} parent=1 // pred_region
      _
    $region13: #{feedforward_ebm_forward.1} parent=1 // pred_fallthru
      _
    // Predicated region
    $region14: #{feedforward_ebm_forward.1} parent=1 // pred_check
      _
    $region15: #{feedforward_ebm_forward.1} parent=1 // pred_check_branch
      %20 = sbr.rel (0) target = $region17
    $region16: #{feedforward_ebm_forward.1} parent=1 // pred_region
      _
    $region17: #{feedforward_ebm_forward.1} parent=1 // pred_fallthru
      _
    // Predicated region
    $region18: #{feedforward_ebm_forward.1} parent=1 // pred_check
      _
    $region19: #{feedforward_ebm_forward.1} parent=1 // pred_check_branch
      %22 = sbr.rel (0) target = $region21
    $region20: #{feedforward_ebm_forward.1} parent=1 // pred_region
      _
    $region21: #{feedforward_ebm_forward.1} parent=1 // pred_fallthru
      _
    // Predicated region
    $region22: #{feedforward_ebm_forward.1} parent=1 // pred_check
      _
    $region23: #{feedforward_ebm_forward.1} parent=1 // pred_check_branch
      %24 = sbr.rel (0) target = $region25
    $region24: #{feedforward_ebm_forward.1} parent=1 // pred_region
      _
    $region25: #{feedforward_ebm_forward.1} parent=1 // pred_fallthru
      _
    // Predicated region
    $region26: #{feedforward_ebm_forward.1} parent=1 // pred_check
      _
    $region27: #{feedforward_ebm_forward.1} parent=1 // pred_check_branch
      %26 = sbr.rel (0) target = $region29
    $region28: #{feedforward_ebm_forward.1} parent=1 // pred_region
      %s28 = ssub.s32 16, 16
      %29 = vsyncadd [#allocation3], %s28
      %s31 = sshll.u32 %s6, 4
      %s32 = int_to_ptr.vmem [resolvable:$true] %s31
      %34 = dma.vmem_to_smem %s32, 16, [#allocation2], [#allocation3]
    $region29: #{feedforward_ebm_forward.1} parent=1 // pred_fallthru
      _
    // Predicated region
    $region30: #{feedforward_ebm_forward.1} parent=1 // pred_check
      _
    $region31: #{feedforward_ebm_forward.1} parent=1 // pred_check_branch
      %36 = sbr.rel (0) target = $region33
    $region32: #{feedforward_ebm_forward.1} parent=1 // pred_region
      %37 = dma.done [#allocation3], 16
    $region33: #{feedforward_ebm_forward.1} parent=1 // pred_fallthru
      _
    %38 = sfence
    %v40 = vld [vmem:[%s1] sm:$0xf]
    %v41 = vld [vmem:[%s1 + $0x4] sm:$0xf]
    %v42 = vld [vmem:[%s1 + $0x8] sm:$0xf]
    %v43 = vld [vmem:[%s1 + $0xc] sm:$0xf]
    %v44 = vld [vmem:[%s1 + $0x10] sm:$0xf]
    %v45 = vld [vmem:[%s1 + $0x14] sm:$0xf]
    %v46 = vld [vmem:[%s1 + $0x18] sm:$0xf]
    %v47 = vld [vmem:[%s1 + $0x1c] sm:$0xf]
    %v48 = vld [vmem:[%s1 + $0x20] sm:$0xf]
    %v49 = vld [vmem:[%s1 + $0x24] sm:$0xf]
    %v50 = vld [vmem:[%s1 + $0x28] sm:$0xf]
    %v51 = vld [vmem:[%s1 + $0x2c] sm:$0xf]
    %v52 = vld [vmem:[%s1 + $0x30] sm:$0xf]
    %v53 = vld [vmem:[%s1 + $0x34] sm:$0xf]
    %v54 = vld [vmem:[%s1 + $0x38] sm:$0xf]
    %v55 = vld [vmem:[%s1 + $0x3c] sm:$0xf]
    %v56 = vld [vmem:[%s1 + $0x40] sm:$0xf]
    %v57 = vld [vmem:[%s1 + $0x44] sm:$0xf]
    %v58 = vld [vmem:[%s1 + $0x48] sm:$0xf]
    %v59 = vld [vmem:[%s1 + $0x4c] sm:$0xf]
    %v60 = vld [vmem:[%s1 + $0x50] sm:$0xf]
    %v61 = vld [vmem:[%s1 + $0x54] sm:$0xf]
    %v62 = vld [vmem:[%s1 + $0x58] sm:$0xf]
    %v63 = vld [vmem:[%s1 + $0x5c] sm:$0xf]
    %v64 = vld [vmem:[%s0] sm:$0xf]
    %v65 = vld [vmem:[%s0 + $0x4] sm:$0xf]
    %v66 = vld [vmem:[%s0 + $0x8] sm:$0xf]
    %v67 = vld [vmem:[%s0 + $0xc] sm:$0xf]
    %v68 = vld [vmem:[%s0 + $0x10] sm:$0xf]
    %v69 = vld [vmem:[%s0 + $0x14] sm:$0xf]
    %v70 = vld [vmem:[%s0 + $0x18] sm:$0xf]
    %v71 = vld [vmem:[%s0 + $0x1c] sm:$0xf]
    %v72 = vld [vmem:[%s0 + $0x20] sm:$0xf]
    %v73 = vld [vmem:[%s0 + $0x24] sm:$0xf]
    %v74 = vld [vmem:[%s0 + $0x28] sm:$0xf]
    %v75 = vld [vmem:[%s0 + $0x2c] sm:$0xf]
    %v76 = vld [vmem:[%s2] sm:$0xff]
    %v77 = vld [vmem:[%s2 + $0x8] sm:$0xff]
    %v78 = vld [vmem:[%s2 + $0x10] sm:$0xff]
    %v79 = vld [vmem:[%s2 + $0x18] sm:$0xff]
    %v80 = vld [vmem:[%s2 + $0x20] sm:$0xff]
    %v81 = vld [vmem:[%s2 + $0x28] sm:$0xff]
    %v82 = vld [vmem:[%s2 + $0x30] sm:$0xff]
    %v83 = vld [vmem:[%s2 + $0x38] sm:$0xff]
    %v84 = vld [vmem:[%s2 + $0x40] sm:$0xff]
    %v85 = vld [vmem:[%s2 + $0x48] sm:$0xff]
    %v86 = vld [vmem:[%s2 + $0x50] sm:$0xff]
    %v87 = vld [vmem:[%s2 + $0x58] sm:$0xff]
    %v88 = vld [vmem:[%s2 + $0x60] sm:$0xff]
    %v89 = vld [vmem:[%s2 + $0x68] sm:$0xff]
    %v90 = vld [vmem:[%s2 + $0x70] sm:$0xff]
    %v91 = vld [vmem:[%s2 + $0x78] sm:$0xff]
    %v92 = vld [vmem:[%s2 + $0x80] sm:$0xff]
    %v93 = vld [vmem:[%s2 + $0x88] sm:$0xff]
    %v94 = vld [vmem:[%s2 + $0x90] sm:$0xff]
    %v95 = vld [vmem:[%s2 + $0x98] sm:$0xff]
    %v96 = vld [vmem:[%s2 + $0xa0] sm:$0xff]
    %v97 = vld [vmem:[%s2 + $0xa8] sm:$0xff]
    %v98 = vld [vmem:[%s2 + $0xb0] sm:$0xff]
    %v99 = vld [vmem:[%s2 + $0xb8] sm:$0xff]
    %101 = vset.pattern.permute.xlu0 0
    %102 = vperm.xlu0 %101, %v76
    %v103 = vpop.permute.xlu0 %102
    %106 = vset.pattern.permute.xlu0 0
    %107 = vperm.xlu0 %106, %v77
    %v108 = vpop.permute.xlu0 %107
    %111 = vset.pattern.permute.xlu0 0
    %112 = vperm.xlu0 %111, %v78
    %v113 = vpop.permute.xlu0 %112
    %116 = vset.pattern.permute.xlu0 0
    %117 = vperm.xlu0 %116, %v79
    %v118 = vpop.permute.xlu0 %117
    %121 = vset.pattern.permute.xlu0 0
    %122 = vperm.xlu0 %121, %v80
    %v123 = vpop.permute.xlu0 %122
    %126 = vset.pattern.permute.xlu0 0
    %127 = vperm.xlu0 %126, %v81
    %v128 = vpop.permute.xlu0 %127
    %131 = vset.pattern.permute.xlu0 0
    %132 = vperm.xlu0 %131, %v82
    %v133 = vpop.permute.xlu0 %132
    %136 = vset.pattern.permute.xlu0 0
    %137 = vperm.xlu0 %136, %v83
    %v138 = vpop.permute.xlu0 %137
    %141 = vset.pattern.permute.xlu0 0
    %142 = vperm.xlu0 %141, %v84
    %v143 = vpop.permute.xlu0 %142
    %146 = vset.pattern.permute.xlu0 0
    %147 = vperm.xlu0 %146, %v85
    %v148 = vpop.permute.xlu0 %147
    %151 = vset.pattern.permute.xlu0 0
    %152 = vperm.xlu0 %151, %v86
    %v153 = vpop.permute.xlu0 %152
    %156 = vset.pattern.permute.xlu0 0
    %157 = vperm.xlu0 %156, %v87
    %v158 = vpop.permute.xlu0 %157
    %161 = vset.pattern.permute.xlu0 0
    %162 = vperm.xlu0 %161, %v88
    %v163 = vpop.permute.xlu0 %162
    %166 = vset.pattern.permute.xlu0 0
    %167 = vperm.xlu0 %166, %v89
    %v168 = vpop.permute.xlu0 %167
    %171 = vset.pattern.permute.xlu0 0
    %172 = vperm.xlu0 %171, %v90
    %v173 = vpop.permute.xlu0 %172
    %176 = vset.pattern.permute.xlu0 0
    %177 = vperm.xlu0 %176, %v91
    %v178 = vpop.permute.xlu0 %177
    %181 = vset.pattern.permute.xlu0 0
    %182 = vperm.xlu0 %181, %v92
    %v183 = vpop.permute.xlu0 %182
    %186 = vset.pattern.permute.xlu0 0
    %187 = vperm.xlu0 %186, %v93
    %v188 = vpop.permute.xlu0 %187
    %191 = vset.pattern.permute.xlu0 0
    %192 = vperm.xlu0 %191, %v94
    %v193 = vpop.permute.xlu0 %192
    %196 = vset.pattern.permute.xlu0 0
    %197 = vperm.xlu0 %196, %v95
    %v198 = vpop.permute.xlu0 %197
    %201 = vset.pattern.permute.xlu0 0
    %202 = vperm.xlu0 %201, %v96
    %v203 = vpop.permute.xlu0 %202
    %206 = vset.pattern.permute.xlu0 0
    %207 = vperm.xlu0 %206, %v97
    %v208 = vpop.permute.xlu0 %207
    %211 = vset.pattern.permute.xlu0 0
    %212 = vperm.xlu0 %211, %v98
    %v213 = vpop.permute.xlu0 %212
    %216 = vset.pattern.permute.xlu0 0
    %217 = vperm.xlu0 %216, %v99
    %v218 = vpop.permute.xlu0 %217
    %v244 = vunpack.c.l.b16 %v40
    %v245 = vunpack.c.l.b16 %v41
    %v246 = vunpack.c.l.b16 %v42
    %v247 = vunpack.c.l.b16 %v43
    %v248 = vunpack.c.l.b16 %v44
    %v249 = vunpack.c.l.b16 %v45
    %v250 = vunpack.c.l.b16 %v46
    %v251 = vunpack.c.l.b16 %v47
    %v252 = vunpack.c.l.b16 %v48
    %v253 = vunpack.c.l.b16 %v49
    %v254 = vunpack.c.l.b16 %v50
    %v255 = vunpack.c.l.b16 %v51
    %v256 = vunpack.c.l.b16 %v52
    %v257 = vunpack.c.l.b16 %v53
    %v258 = vunpack.c.l.b16 %v54
    %v259 = vunpack.c.l.b16 %v55
    %v260 = vunpack.c.l.b16 %v56
    %v261 = vunpack.c.l.b16 %v57
    %v262 = vunpack.c.l.b16 %v58
    %v263 = vunpack.c.l.b16 %v59
    %v264 = vunpack.c.l.b16 %v60
    %v265 = vunpack.c.l.b16 %v61
    %v266 = vunpack.c.l.b16 %v62
    %v267 = vunpack.c.l.b16 %v63
    %v268 = vpack.c.b16 %v245, %v244
    %v269 = vpack.c.b16 %v247, %v246
    %v270 = vpack.c.b16 %v249, %v248
    %v271 = vpack.c.b16 %v251, %v250
    %v272 = vpack.c.b16 %v253, %v252
    %v273 = vpack.c.b16 %v255, %v254
    %v274 = vpack.c.b16 %v257, %v256
    %v275 = vpack.c.b16 %v259, %v258
    %v276 = vpack.c.b16 %v261, %v260
    %v277 = vpack.c.b16 %v263, %v262
    %v278 = vpack.c.b16 %v265, %v264
    %v279 = vpack.c.b16 %v267, %v266
    %v292 = vunpack.c.l.b16 %v64
    %v293 = vunpack.c.l.b16 %v65
    %v294 = vunpack.c.l.b16 %v66
    %v295 = vunpack.c.l.b16 %v67
    %v296 = vunpack.c.l.b16 %v68
    %v297 = vunpack.c.l.b16 %v69
    %v298 = vunpack.c.l.b16 %v70
    %v299 = vunpack.c.l.b16 %v71
    %v300 = vunpack.c.l.b16 %v72
    %v301 = vunpack.c.l.b16 %v73
    %v302 = vunpack.c.l.b16 %v74
    %v303 = vunpack.c.l.b16 %v75
    %v304 = vpack.c.b16 %v293, %v292
    %v305 = vpack.c.b16 %v295, %v294
    %v306 = vpack.c.b16 %v297, %v296
    %v307 = vpack.c.b16 %v299, %v298
    %v308 = vpack.c.b16 %v301, %v300
    %v309 = vpack.c.b16 %v303, %v302
    %vm316 = vcmask 785408
    %v318 = vsel %vm316, %v268, 0
    %v321 = vsel %vm316, %v269, 0
    %v324 = vsel %vm316, %v270, 0
    %v327 = vsel %vm316, %v271, 0
    %v330 = vsel %vm316, %v272, 0
    %v333 = vsel %vm316, %v273, 0
    %v336 = vsel %vm316, %v274, 0
    %v339 = vsel %vm316, %v275, 0
    %v342 = vsel %vm316, %v276, 0
    %v345 = vsel %vm316, %v277, 0
    %v348 = vsel %vm316, %v278, 0
    %v351 = vsel %vm316, %v279, 0
    %353 = vmatprep.subr.bf16.mxu0 0
    %354 = vmatpush1.bf16.msra.mxu0 %v304
    %355 = vmatprep.subr.bf16.mxu0 0
    %356 = vmatpush1.bf16.msra.mxu0 %v305
    %357 = vmatprep.subr.bf16.mxu0 0
    %358 = vmatpush1.bf16.msra.mxu0 %v306
    %359 = vmatprep.subr.bf16.mxu0 0
    %360 = vmatpush1.bf16.msra.mxu0 %v307
    %361 = vmatprep.subr.bf16.mxu0 0
    %362 = vmatpush1.bf16.msra.mxu0 %v308
    %363 = vmatprep.subr.bf16.mxu0 0
    %364 = vmatpush1.bf16.msra.mxu0 %v309
    %365 = vmatprep.subr.bf16.mxu0 0
    %366 = vmatpush1.bf16.msra.mxu0 0
    %367 = vmatprep.subr.bf16.mxu0 0
    %368 = vmatpush1.bf16.msra.mxu0 0
    %369 = vmatprep.subr.bf16.mxu0 0
    %370 = vmatpush1.bf16.msra.mxu0 0
    %371 = vmatprep.subr.bf16.mxu0 0
    %372 = vmatpush1.bf16.msra.mxu0 0
    %373 = vmatprep.subr.bf16.mxu0 0
    %374 = vmatpush1.bf16.msra.mxu0 0
    %375 = vmatprep.subr.bf16.mxu0 0
    %376 = vmatpush1.bf16.msra.mxu0 0
    %377 = vmatprep.subr.bf16.mxu0 0
    %378 = vmatpush1.bf16.msra.mxu0 0
    %379 = vmatprep.subr.bf16.mxu0 0
    %380 = vmatpush1.bf16.msra.mxu0 0
    %381 = vmatprep.subr.bf16.mxu0 0
    %382 = vmatpush1.bf16.msra.mxu0 0
    %383 = vmatprep.subr.bf16.mxu0 0
    %384 = vmatpush1.bf16.msra.mxu0 0
    %385 = vmatprep.mubr.bf16.mxu0 0
    %386 = vmatmul.mubr.bf16.gmra.mrb[0].mxu0 %v318
    %v387 = vpop.f32.mrb[0].mxu0
    %v388 = vadd.f32 %v103, %v387
    %v389 = vpop.f32.mrb[0].mxu0
    %v390 = vpop.f32.mrb[0].mxu0
    %v391 = vadd.f32 %v108, %v390
    %v392 = vpop.f32.mrb[0].mxu0
    %393 = vmatprep.mubr.bf16.mxu0 0
    %394 = vmatmul.mubr.bf16.gmra.mrb[0].mxu0 %v321
    %v395 = vpop.f32.mrb[0].mxu0
    %v396 = vadd.f32 %v113, %v395
    %v397 = vpop.f32.mrb[0].mxu0
    %v398 = vpop.f32.mrb[0].mxu0
    %v399 = vadd.f32 %v118, %v398
    %v400 = vpop.f32.mrb[0].mxu0
    %401 = vmatprep.mubr.bf16.mxu0 0
    %402 = vmatmul.mubr.bf16.gmra.mrb[0].mxu0 %v324
    %v403 = vpop.f32.mrb[0].mxu0
    %v404 = vadd.f32 %v123, %v403
    %v405 = vpop.f32.mrb[0].mxu0
    %v406 = vpop.f32.mrb[0].mxu0
    %v407 = vadd.f32 %v128, %v406
    %v408 = vpop.f32.mrb[0].mxu0
    %409 = vmatprep.mubr.bf16.mxu0 0
    %410 = vmatmul.mubr.bf16.gmra.mrb[0].mxu0 %v327
    %v411 = vpop.f32.mrb[0].mxu0
    %v412 = vadd.f32 %v133, %v411
    %v413 = vpop.f32.mrb[0].mxu0
    %v414 = vpop.f32.mrb[0].mxu0
    %v415 = vadd.f32 %v138, %v414
    %v416 = vpop.f32.mrb[0].mxu0
    %417 = vmatprep.mubr.bf16.mxu0 0
    %418 = vmatmul.mubr.bf16.gmra.mrb[0].mxu0 %v330
    %v419 = vpop.f32.mrb[0].mxu0
    %v420 = vadd.f32 %v143, %v419
    %v421 = vpop.f32.mrb[0].mxu0
    %v422 = vpop.f32.mrb[0].mxu0
    %v423 = vadd.f32 %v148, %v422
    %v424 = vpop.f32.mrb[0].mxu0
    %425 = vmatprep.mubr.bf16.mxu0 0
    %426 = vmatmul.mubr.bf16.gmra.mrb[0].mxu0 %v333
    %v427 = vpop.f32.mrb[0].mxu0
    %v428 = vadd.f32 %v153, %v427
    %v429 = vpop.f32.mrb[0].mxu0
    %v430 = vpop.f32.mrb[0].mxu0
    %v431 = vadd.f32 %v158, %v430
    %v432 = vpop.f32.mrb[0].mxu0
    %433 = vmatprep.mubr.bf16.mxu0 0
    %434 = vmatmul.mubr.bf16.gmra.mrb[0].mxu0 %v336
    %v435 = vpop.f32.mrb[0].mxu0
    %v436 = vadd.f32 %v163, %v435
    %v437 = vpop.f32.mrb[0].mxu0
    %v438 = vpop.f32.mrb[0].mxu0
    %v439 = vadd.f32 %v168, %v438
    %v440 = vpop.f32.mrb[0].mxu0
    %441 = vmatprep.mubr.bf16.mxu0 0
    %442 = vmatmul.mubr.bf16.gmra.mrb[0].mxu0 %v339
    %v443 = vpop.f32.mrb[0].mxu0
    %v444 = vadd.f32 %v173, %v443
    %v445 = vpop.f32.mrb[0].mxu0
    %v446 = vpop.f32.mrb[0].mxu0
    %v447 = vadd.f32 %v178, %v446
    %v448 = vpop.f32.mrb[0].mxu0
    %449 = vmatprep.mubr.bf16.mxu0 0
    %450 = vmatmul.mubr.bf16.gmra.mrb[0].mxu0 %v342
    %v451 = vpop.f32.mrb[0].mxu0
    %v452 = vadd.f32 %v183, %v451
    %v453 = vpop.f32.mrb[0].mxu0
    %v454 = vpop.f32.mrb[0].mxu0
    %v455 = vadd.f32 %v188, %v454
    %v456 = vpop.f32.mrb[0].mxu0
    %457 = vmatprep.mubr.bf16.mxu0 0
    %458 = vmatmul.mubr.bf16.gmra.mrb[0].mxu0 %v345
    %v459 = vpop.f32.mrb[0].mxu0
    %v460 = vadd.f32 %v193, %v459
    %v461 = vpop.f32.mrb[0].mxu0
    %v462 = vpop.f32.mrb[0].mxu0
    %v463 = vadd.f32 %v198, %v462
    %v464 = vpop.f32.mrb[0].mxu0
    %465 = vmatprep.mubr.bf16.mxu0 0
    %466 = vmatmul.mubr.bf16.gmra.mrb[0].mxu0 %v348
    %v467 = vpop.f32.mrb[0].mxu0
    %v468 = vadd.f32 %v203, %v467
    %v469 = vpop.f32.mrb[0].mxu0
    %v470 = vpop.f32.mrb[0].mxu0
    %v471 = vadd.f32 %v208, %v470
    %v472 = vpop.f32.mrb[0].mxu0
    %473 = vmatprep.mubr.bf16.mxu0 0
    %474 = vmatmul.mubr.bf16.gmra.mrb[0].mxu0 %v351
    %v475 = vpop.f32.mrb[0].mxu0
    %v476 = vadd.f32 %v213, %v475
    %v477 = vpop.f32.mrb[0].mxu0
    %v478 = vpop.f32.mrb[0].mxu0
    %v479 = vadd.f32 %v218, %v478
    %v480 = vpop.f32.mrb[0].mxu0
    %481 = vdwg.mxu0
    %v482 = vmax.f32 %v388, 0.0
    %v483 = vmax.f32 %v391, 0.0
    %v484 = vmax.f32 %v396, 0.0
    %v485 = vmax.f32 %v399, 0.0
    %v486 = vmax.f32 %v404, 0.0
    %v487 = vmax.f32 %v407, 0.0
    %v488 = vmax.f32 %v412, 0.0
    %v489 = vmax.f32 %v415, 0.0
    %v490 = vmax.f32 %v420, 0.0
    %v491 = vmax.f32 %v423, 0.0
    %v492 = vmax.f32 %v428, 0.0
    %v493 = vmax.f32 %v431, 0.0
    %v494 = vmax.f32 %v436, 0.0
    %v495 = vmax.f32 %v439, 0.0
    %v496 = vmax.f32 %v444, 0.0
    %v497 = vmax.f32 %v447, 0.0
    %v498 = vmax.f32 %v452, 0.0
    %v499 = vmax.f32 %v455, 0.0
    %v500 = vmax.f32 %v460, 0.0
    %v501 = vmax.f32 %v463, 0.0
    %v502 = vmax.f32 %v468, 0.0
    %v503 = vmax.f32 %v471, 0.0
    %v504 = vmax.f32 %v476, 0.0
    %v505 = vmax.f32 %v479, 0.0
    %v506 = vld [vmem:[%s3] sm:$0xff]
    %v507 = vld [vmem:[%s3 + $0x8] sm:$0xff]
    %v508 = vld [vmem:[%s3 + $0x10] sm:$0xff]
    %v509 = vld [vmem:[%s3 + $0x18] sm:$0xff]
    %v510 = vld [vmem:[%s3 + $0x20] sm:$0xff]
    %v511 = vld [vmem:[%s3 + $0x28] sm:$0xff]
    %v512 = vld [vmem:[%s3 + $0x30] sm:$0xff]
    %v513 = vld [vmem:[%s3 + $0x38] sm:$0xff]
    %v514 = vld [vmem:[%s3 + $0x40] sm:$0xff]
    %v515 = vld [vmem:[%s3 + $0x48] sm:$0xff]
    %v516 = vld [vmem:[%s3 + $0x50] sm:$0xff]
    %v517 = vld [vmem:[%s3 + $0x58] sm:$0xff]
    %v518 = vld [vmem:[%s3 + $0x60] sm:$0xff]
    %v519 = vpack.c.bf16 %v483, %v482
    %v520 = vpack.c.bf16 %v485, %v484
    %v521 = vpack.c.bf16 %v487, %v486
    %v522 = vpack.c.bf16 %v489, %v488
    %v523 = vpack.c.bf16 %v491, %v490
    %v524 = vpack.c.bf16 %v493, %v492
    %v525 = vpack.c.bf16 %v495, %v494
    %v526 = vpack.c.bf16 %v497, %v496
    %v527 = vpack.c.bf16 %v499, %v498
    %v528 = vpack.c.bf16 %v501, %v500
    %v529 = vpack.c.bf16 %v503, %v502
    %v530 = vpack.c.bf16 %v505, %v504
    %v531 = vld [vmem:[%s4] sm:$0xff]
    %v532 = vld [vmem:[%s4 + $0x8] sm:$0xff]
    %v533 = vld [vmem:[%s4 + $0x10] sm:$0xff]
    %v534 = vld [vmem:[%s4 + $0x18] sm:$0xff]
    %v535 = vld [vmem:[%s4 + $0x20] sm:$0xff]
    %v536 = vld [vmem:[%s4 + $0x28] sm:$0xff]
    %v537 = vld [vmem:[%s4 + $0x30] sm:$0xff]
    %v538 = vld [vmem:[%s4 + $0x38] sm:$0xff]
    %v539 = vld [vmem:[%s4 + $0x40] sm:$0xff]
    %v540 = vld [vmem:[%s4 + $0x48] sm:$0xff]
    %v541 = vld [vmem:[%s4 + $0x50] sm:$0xff]
    %v542 = vld [vmem:[%s4 + $0x58] sm:$0xff]
    %v543 = vld [vmem:[%s4 + $0x60] sm:$0xff]
    %545 = vset.pattern.permute.xlu0 0
    %546 = vperm.xlu0 %545, %v531
    %v547 = vpop.permute.xlu0 %546
    %550 = vset.pattern.permute.xlu0 0
    %551 = vperm.xlu0 %550, %v532
    %v552 = vpop.permute.xlu0 %551
    %555 = vset.pattern.permute.xlu0 0
    %556 = vperm.xlu0 %555, %v533
    %v557 = vpop.permute.xlu0 %556
    %560 = vset.pattern.permute.xlu0 0
    %561 = vperm.xlu0 %560, %v534
    %v562 = vpop.permute.xlu0 %561
    %565 = vset.pattern.permute.xlu0 0
    %566 = vperm.xlu0 %565, %v535
    %v567 = vpop.permute.xlu0 %566
    %570 = vset.pattern.permute.xlu0 0
    %571 = vperm.xlu0 %570, %v536
    %v572 = vpop.permute.xlu0 %571
    %575 = vset.pattern.permute.xlu0 0
    %576 = vperm.xlu0 %575, %v537
    %v577 = vpop.permute.xlu0 %576
    %580 = vset.pattern.permute.xlu0 0
    %581 = vperm.xlu0 %580, %v538
    %v582 = vpop.permute.xlu0 %581
    %585 = vset.pattern.permute.xlu0 0
    %586 = vperm.xlu0 %585, %v539
    %v587 = vpop.permute.xlu0 %586
    %590 = vset.pattern.permute.xlu0 0
    %591 = vperm.xlu0 %590, %v540
    %v592 = vpop.permute.xlu0 %591
    %595 = vset.pattern.permute.xlu0 0
    %596 = vperm.xlu0 %595, %v541
    %v597 = vpop.permute.xlu0 %596
    %600 = vset.pattern.permute.xlu0 0
    %601 = vperm.xlu0 %600, %v542
    %v602 = vpop.permute.xlu0 %601
    %605 = vset.pattern.permute.xlu0 0
    %606 = vperm.xlu0 %605, %v543
    %v607 = vpop.permute.xlu0 %606
    %v622 = vunpack.c.l.b16 %v506
    %v623 = vunpack.c.h.b16 %v506
    %v624 = vunpack.c.l.b16 %v507
    %v625 = vunpack.c.h.b16 %v507
    %v626 = vunpack.c.l.b16 %v508
    %v627 = vunpack.c.h.b16 %v508
    %v628 = vunpack.c.l.b16 %v509
    %v629 = vunpack.c.h.b16 %v509
    %v630 = vunpack.c.l.b16 %v510
    %v631 = vunpack.c.h.b16 %v510
    %v632 = vunpack.c.l.b16 %v511
    %v633 = vunpack.c.h.b16 %v511
    %v634 = vunpack.c.l.b16 %v512
    %v635 = vunpack.c.h.b16 %v512
    %v636 = vunpack.c.l.b16 %v513
    %v637 = vunpack.c.h.b16 %v513
    %v638 = vunpack.c.l.b16 %v514
    %v639 = vunpack.c.h.b16 %v514
    %v640 = vunpack.c.l.b16 %v515
    %v641 = vunpack.c.h.b16 %v515
    %v642 = vunpack.c.l.b16 %v516
    %v643 = vunpack.c.h.b16 %v516
    %v644 = vunpack.c.l.b16 %v517
    %v645 = vunpack.c.h.b16 %v517
    %v646 = vunpack.c.l.b16 %v518
    %v647 = vunpack.c.h.b16 %v518
    %v648 = vpack.c.b16 %v624, %v622
    %v649 = vpack.c.b16 %v625, %v623
    %v650 = vpack.c.b16 %v628, %v626
    %v651 = vpack.c.b16 %v629, %v627
    %v652 = vpack.c.b16 %v632, %v630
    %v653 = vpack.c.b16 %v633, %v631
    %v654 = vpack.c.b16 %v636, %v634
    %v655 = vpack.c.b16 %v637, %v635
    %v656 = vpack.c.b16 %v640, %v638
    %v657 = vpack.c.b16 %v641, %v639
    %v658 = vpack.c.b16 %v644, %v642
    %v659 = vpack.c.b16 %v645, %v643
    %v660 = vpack.c.b16 %v646, %v646
    %v661 = vpack.c.b16 %v647, %v647
    %vm669 = vcmask 523264
    %v671 = vsel %vm669, %v649, 0
    %v674 = vsel %vm669, %v651, 0
    %v677 = vsel %vm669, %v653, 0
    %v680 = vsel %vm669, %v655, 0
    %v683 = vsel %vm669, %v657, 0
    %v686 = vsel %vm669, %v659, 0
    %v689 = vsel %vm669, %v661, 0
    %691 = vmatprep.subr.bf16.mxu0 0
    %692 = vmatpush1.bf16.msra.mxu0 %v519
    %693 = vmatprep.subr.bf16.mxu0 0
    %694 = vmatpush1.bf16.msra.mxu0 %v520
    %695 = vmatprep.subr.bf16.mxu0 0
    %696 = vmatpush1.bf16.msra.mxu0 %v521
    %697 = vmatprep.subr.bf16.mxu0 0
    %698 = vmatpush1.bf16.msra.mxu0 %v522
    %699 = vmatprep.subr.bf16.mxu0 0
    %700 = vmatpush1.bf16.msra.mxu0 %v523
    %701 = vmatprep.subr.bf16.mxu0 0
    %702 = vmatpush1.bf16.msra.mxu0 %v524
    %703 = vmatprep.subr.bf16.mxu0 0
    %704 = vmatpush1.bf16.msra.mxu0 %v525
    %705 = vmatprep.subr.bf16.mxu0 0
    %706 = vmatpush1.bf16.msra.mxu0 %v526
    %707 = vmatprep.subr.bf16.mxu0 0
    %708 = vmatpush1.bf16.msra.mxu0 %v527
    %709 = vmatprep.subr.bf16.mxu0 0
    %710 = vmatpush1.bf16.msra.mxu0 %v528
    %711 = vmatprep.subr.bf16.mxu0 0
    %712 = vmatpush1.bf16.msra.mxu0 %v529
    %713 = vmatprep.subr.bf16.mxu0 0
    %714 = vmatpush1.bf16.msra.mxu0 %v530
    %715 = vmatprep.subr.bf16.mxu0 0
    %716 = vmatpush1.bf16.msra.mxu0 0
    %717 = vmatprep.subr.bf16.mxu0 0
    %718 = vmatpush1.bf16.msra.mxu0 0
    %719 = vmatprep.subr.bf16.mxu0 0
    %720 = vmatpush1.bf16.msra.mxu0 0
    %721 = vmatprep.subr.bf16.mxu0 0
    %722 = vmatpush1.bf16.msra.mxu0 0
    %723 = vmatprep.mubr.bf16.mxu0 %v671
    %724 = vmatmul.mubr.bf16.gmra.mrb[0].mxu0 %v648
    %v725 = vpop.f32.mrb[0].mxu0
    %v726 = vadd.f32 %v547, %v725
    %v727 = vpop.f32.mrb[0].mxu0
    %v728 = vpop.f32.mrb[0].mxu0
    %v729 = vadd.f32 %v552, %v728
    %v730 = vpop.f32.mrb[0].mxu0
    %731 = vmatprep.mubr.bf16.mxu0 %v674
    %732 = vmatmul.mubr.bf16.gmra.mrb[0].mxu0 %v650
    %v733 = vpop.f32.mrb[0].mxu0
    %v734 = vadd.f32 %v557, %v733
    %v735 = vpop.f32.mrb[0].mxu0
    %v736 = vpop.f32.mrb[0].mxu0
    %v737 = vadd.f32 %v562, %v736
    %v738 = vpop.f32.mrb[0].mxu0
    %739 = vmatprep.mubr.bf16.mxu0 %v677
    %740 = vmatmul.mubr.bf16.gmra.mrb[0].mxu0 %v652
    %v741 = vpop.f32.mrb[0].mxu0
    %v742 = vadd.f32 %v567, %v741
    %v743 = vpop.f32.mrb[0].mxu0
    %v744 = vpop.f32.mrb[0].mxu0
    %v745 = vadd.f32 %v572, %v744
    %v746 = vpop.f32.mrb[0].mxu0
    %747 = vmatprep.mubr.bf16.mxu0 %v680
    %748 = vmatmul.mubr.bf16.gmra.mrb[0].mxu0 %v654
    %v749 = vpop.f32.mrb[0].mxu0
    %v750 = vadd.f32 %v577, %v749
    %v751 = vpop.f32.mrb[0].mxu0
    %v752 = vpop.f32.mrb[0].mxu0
    %v753 = vadd.f32 %v582, %v752
    %v754 = vpop.f32.mrb[0].mxu0
    %755 = vmatprep.mubr.bf16.mxu0 %v683
    %756 = vmatmul.mubr.bf16.gmra.mrb[0].mxu0 %v656
    %v757 = vpop.f32.mrb[0].mxu0
    %v758 = vadd.f32 %v587, %v757
    %v759 = vpop.f32.mrb[0].mxu0
    %v760 = vpop.f32.mrb[0].mxu0
    %v761 = vadd.f32 %v592, %v760
    %v762 = vpop.f32.mrb[0].mxu0
    %763 = vmatprep.mubr.bf16.mxu0 %v686
    %764 = vmatmul.mubr.bf16.gmra.mrb[0].mxu0 %v658
    %v765 = vpop.f32.mrb[0].mxu0
    %v766 = vadd.f32 %v597, %v765
    %v767 = vpop.f32.mrb[0].mxu0
    %v768 = vpop.f32.mrb[0].mxu0
    %v769 = vadd.f32 %v602, %v768
    %v770 = vpop.f32.mrb[0].mxu0
    %771 = vmatprep.mubr.bf16.mxu0 %v689
    %772 = vmatmul.mubr.bf16.gmra.mrb[0].mxu0 %v660
    %v773 = vpop.f32.mrb[0].mxu0
    %v774 = vadd.f32 %v607, %v773
    %v775 = vpop.f32.mrb[0].mxu0
    %v776 = vpop.f32.mrb[0].mxu0
    %v777 = vpop.f32.mrb[0].mxu0
    %778 = vdwg.mxu0
    %v779 = vmul.f32 %v726, %v742
    %v780 = vmul.f32 %v729, %v745
    %v781 = vmul.f32 %v734, %v750
    %v782 = vmul.f32 %v737, %v753
    %v783 = vadd.f32 %v779, %v780
    %v784 = vadd.f32 %v783, %v781
    %v785 = vadd.f32 %v784, %v782
    %v786 = vrot.slane %v785, 4
    %v787 = vadd.f32 %v785, %v786
    %v788 = vrot.slane %v787, 2
    %v789 = vadd.f32 %v787, %v788
    %v790 = vrot.slane %v789, 1
    %v791 = vadd.f32 %v789, %v790
    %v792 = vmul.f32 %v726, %v726
    %v793 = vmul.f32 %v729, %v729
    %v794 = vmul.f32 %v734, %v734
    %v795 = vmul.f32 %v737, %v737
    %v796 = vadd.f32 %v792, %v793
    %v797 = vadd.f32 %v796, %v794
    %v798 = vadd.f32 %v797, %v795
    %v799 = vrot.slane %v798, 4
    %v800 = vadd.f32 %v798, %v799
    %v801 = vrot.slane %v800, 2
    %v802 = vadd.f32 %v800, %v801
    %v803 = vrot.slane %v802, 1
    %v804 = vadd.f32 %v802, %v803
    %v805 = vmul.f32 %v742, %v742
    %v806 = vmul.f32 %v745, %v745
    %v807 = vmul.f32 %v750, %v750
    %v808 = vmul.f32 %v753, %v753
    %v809 = vadd.f32 %v805, %v806
    %v810 = vadd.f32 %v809, %v807
    %v811 = vadd.f32 %v810, %v808
    %v812 = vrot.slane %v811, 4
    %v813 = vadd.f32 %v811, %v812
    %v814 = vrot.slane %v813, 2
    %v815 = vadd.f32 %v813, %v814
    %v816 = vrot.slane %v815, 1
    %v817 = vadd.f32 %v815, %v816
    %v818 = vmul.f32 %v804, %v817
    %v819 = vmax.f32 %v818, 1e-16
    %v820 = vrsqrt.pop %v819
    %v821 = vmul.f32 %v791, %v820
    %v822 = vld [vmem:[%s5] sm:$0xff]
    %v823 = vld [vmem:[%s5 + $0x8] sm:$0xff]
    %v824 = vld [vmem:[%s5 + $0x10] sm:$0xff]
    %v825 = vld [vmem:[%s5 + $0x18] sm:$0xff]
    %v826 = vld [vmem:[%s5 + $0x20] sm:$0xff]
    %v827 = vld [vmem:[%s5 + $0x28] sm:$0xff]
    %v828 = vld [vmem:[%s5 + $0x30] sm:$0xff]
    %v829 = vld [vmem:[%s5 + $0x38] sm:$0xff]
    %v830 = vld [vmem:[%s5 + $0x40] sm:$0xff]
    %v831 = vld [vmem:[%s5 + $0x48] sm:$0xff]
    %v832 = vld [vmem:[%s5 + $0x50] sm:$0xff]
    %v833 = vld [vmem:[%s5 + $0x58] sm:$0xff]
    %835 = vset.pattern.permute.xlu0 0
    %836 = vperm.xlu0 %835, %v822
    %v837 = vpop.permute.xlu0 %836
    %840 = vset.pattern.permute.xlu0 0
    %841 = vperm.xlu0 %840, %v823
    %v842 = vpop.permute.xlu0 %841
    %845 = vset.pattern.permute.xlu0 0
    %846 = vperm.xlu0 %845, %v824
    %v847 = vpop.permute.xlu0 %846
    %850 = vset.pattern.permute.xlu0 0
    %851 = vperm.xlu0 %850, %v825
    %v852 = vpop.permute.xlu0 %851
    %v854 = vmul.f32 %v779, %v837
    %v855 = vmul.f32 %v780, %v842
    %v856 = vmul.f32 %v781, %v847
    %v857 = vmul.f32 %v782, %v852
    %v858 = vmul.f32 %v758, %v726
    %v859 = vmul.f32 %v761, %v729
    %v860 = vmul.f32 %v766, %v734
    %v861 = vmul.f32 %v769, %v737
    %863 = vset.pattern.permute.xlu0 0
    %864 = vperm.xlu0 %863, %v826
    %v865 = vpop.permute.xlu0 %864
    %868 = vset.pattern.permute.xlu0 0
    %869 = vperm.xlu0 %868, %v827
    %v870 = vpop.permute.xlu0 %869
    %873 = vset.pattern.permute.xlu0 0
    %874 = vperm.xlu0 %873, %v828
    %v875 = vpop.permute.xlu0 %874
    %878 = vset.pattern.permute.xlu0 0
    %879 = vperm.xlu0 %878, %v829
    %v880 = vpop.permute.xlu0 %879
    %v882 = vmul.f32 %v858, %v865
    %v883 = vmul.f32 %v859, %v870
    %v884 = vmul.f32 %v860, %v875
    %v885 = vmul.f32 %v861, %v880
    %v886 = vadd.f32 %v854, %v882
    %v887 = vadd.f32 %v855, %v883
    %v888 = vadd.f32 %v856, %v884
    %v889 = vadd.f32 %v857, %v885
    %v890 = vmul.f32 %v758, %v742
    %v891 = vmul.f32 %v761, %v745
    %v892 = vmul.f32 %v766, %v750
    %v893 = vmul.f32 %v769, %v753
    %895 = vset.pattern.permute.xlu0 0
    %896 = vperm.xlu0 %895, %v830
    %v897 = vpop.permute.xlu0 %896
    %900 = vset.pattern.permute.xlu0 0
    %901 = vperm.xlu0 %900, %v831
    %v902 = vpop.permute.xlu0 %901
    %905 = vset.pattern.permute.xlu0 0
    %906 = vperm.xlu0 %905, %v832
    %v907 = vpop.permute.xlu0 %906
    %910 = vset.pattern.permute.xlu0 0
    %911 = vperm.xlu0 %910, %v833
    %v912 = vpop.permute.xlu0 %911
    %v914 = vmul.f32 %v890, %v897
    %v915 = vmul.f32 %v891, %v902
    %v916 = vmul.f32 %v892, %v907
    %v917 = vmul.f32 %v893, %v912
    %v918 = vadd.f32 %v886, %v914
    %v919 = vadd.f32 %v887, %v915
    %v920 = vadd.f32 %v888, %v916
    %v921 = vadd.f32 %v889, %v917
    %v922 = vadd.f32 %v918, %v919
    %v923 = vadd.f32 %v922, %v920
    %v924 = vadd.f32 %v923, %v921
    %v925 = vrot.slane %v924, 4
    %v926 = vadd.f32 %v924, %v925
    %v927 = vrot.slane %v926, 2
    %v928 = vadd.f32 %v926, %v927
    %v929 = vrot.slane %v928, 1
    %v930 = vadd.f32 %v928, %v929
    %v931 = vadd.f32 %v774, %v930
    %s932 = sld [smem:[#allocation2]]
    %v933 = vstv %s932
    %v934 = vmul.f32 %v821, %v933
    %v935 = vadd.f32 %v931, %v934
    %s936 = sld [smem:[#allocation2 + $0x1]]
    %v937 = vstv %s936
    %v938 = vadd.f32 %v935, %v937
    %939 = vst [vmem:[%s7] sm:$0x1] %v938
    // Predicated region
    $region34: #{feedforward_ebm_forward.1} parent=1 // pred_check
      _
    $region35: #{feedforward_ebm_forward.1} parent=1 // pred_check_branch
      %941 = sbr.rel (0) target = $region37
    $region36: #{feedforward_ebm_forward.1} parent=1 // pred_region
      _
    $region37: #{feedforward_ebm_forward.1} parent=1 // pred_fallthru
      _
    // Predicated region
    $region38: #{feedforward_ebm_forward.1} parent=1 // pred_check
      _
    $region39: #{feedforward_ebm_forward.1} parent=1 // pred_check_branch
      %943 = sbr.rel (0) target = $region41
    $region40: #{feedforward_ebm_forward.1} parent=1 // pred_region
      _
    $region41: #{feedforward_ebm_forward.1} parent=1 // pred_fallthru
      _
    %944 = vsyncpa [#allocation3], 1

</llo_original>
